<compile_context>
chip_gen: v5e
topology: v5e:2x2
jax: 0.10.0
libtpu: 0.0.40
codegen_flags: <defaults>
</compile_context>

<pallas_src>
import jax
import jax.numpy as jnp
from jax.experimental import pallas as pl
from jax.experimental.pallas import tpu as pltpu


def _id_layer_kernel(bias_ref, x_ref, o_ref):
    # bias_ref: (1, 1) float32 scalar in SMEM
    # x_ref:    (C+1, tn) VMEM tile (includes the const-ones channel 0)
    # o_ref:    (C,   tn) VMEM tile
    bias = bias_ref[0, 0].astype(o_ref.dtype)
    # Drop the const channel in VMEM; the HBM DMA stays one contiguous slab.
    o_ref[...] = (x_ref[1:, :] + bias).astype(o_ref.dtype)
    # TODO(synk): if a non-identity `act` is configured, apply it here
    # (e.g. jnp.maximum(..., 0) for ReLU) so it stays fused with the add.


def _pick_col_block(hw, cp1, itemsize, max_block_bytes=4 << 20):
    """Largest lane-dense (multiple-of-128) column block that divides hw and
    keeps the (C+1, tn) input block under max_block_bytes."""
    if hw % 128 != 0:
        # Odd spatial size: use a full-extent trailing block (allowed by the
        # (8,128) rule when the block dim equals the full array dim).
        return hw
    max_elems = max(128, max_block_bytes // (cp1 * itemsize))
    tn = min(hw, (max_elems // 128) * 128)
    while hw % tn != 0:
        tn -= 128
    return tn


def id_layer_forward(x, bias: float = 0.0):
    """IdLayer.forward: act(x[:, 1:] + bias) with act = Identity.

    x: (B, C+1, H, W) float array (channel 0 is the const-ones channel).
    returns: (B, C, H, W)
    """
    B, Cp1, H, W = x.shape
    C = Cp1 - 1
    assert C >= 1, "input must carry the const channel at index 0"
    HW = H * W

    # Free metadata reshape: merge H, W into one lane-dense trailing axis.
    x3 = x.reshape(B, Cp1, HW)

    tn = _pick_col_block(HW, Cp1, jnp.dtype(x.dtype).itemsize)
    n_col = HW // tn  # tn always divides HW by construction

    bias_arr = jnp.asarray(bias, dtype=jnp.float32).reshape(1, 1)

    out3 = pl.pallas_call(
        _id_layer_kernel,
        out_shape=jax.ShapeDtypeStruct((B, C, HW), x.dtype),
        grid=(B, n_col),
        in_specs=[
            # scalar bias lives in SMEM; no recompile when its value changes
            pl.BlockSpec(memory_space=pltpu.MemorySpace.SMEM),
            # one contiguous (C+1, tn) slab per (batch, column-block) step
            pl.BlockSpec((None, Cp1, tn), lambda b, j: (b, 0, j)),
        ],
        out_specs=pl.BlockSpec((None, C, tn), lambda b, j: (b, 0, j)),
        compiler_params=pltpu.CompilerParams(
            dimension_semantics=("parallel", "parallel"),
        ),
    )(bias_arr, x3)

    return out3.reshape(B, C, H, W)


if __name__ == "__main__":
    key = jax.random.PRNGKey(0)

    # IdLayer(channel=4, bias=0.5): module params are just `channel` and the
    # scalar `bias` — no learned weights, so nothing else to initialize.
    channel = 4
    bias = 0.5
    B, H, W = 2, 16, 16

    # Build input with the const all-ones channel at index 0, as the PyTorch
    # forward expects.
    x_core = jax.random.normal(key, (B, channel, H, W), dtype=jnp.float32)
    ones = jnp.ones((B, 1, H, W), dtype=jnp.float32)
    x = jnp.concatenate([ones, x_core], axis=1)  # (B, channel+1, H, W)

    out = id_layer_forward(x, bias=bias)
    out = jax.block_until_ready(out)

    # Reference check against the plain-JAX equivalent of the PyTorch forward.
    ref = x[:, 1:] + bias
    assert out.shape == (B, channel, H, W)
    assert jnp.allclose(out, ref, atol=1e-6, rtol=1e-6)

    print("KERNEL_OK")
</pallas_src>

<mosaic_0001>
module attributes {stable_mosaic.version = 11 : i64} {
  func.func @_id_layer_kernel(%arg0: i32, %arg1: i32, %arg2: memref<1x1xf32, #tpu.memory_space<smem>>, %arg3: memref<1x5x256xf32, #tpu.memory_space<vmem>>, %arg4: memref<1x4x256xf32, #tpu.memory_space<vmem>>) attributes {dimension_semantics = [#tpu.dimension_semantics<parallel>, #tpu.dimension_semantics<parallel>], iteration_bounds = array<i64: 2, 1>, scalar_prefetch = 0 : i64, scratch_operands = 0 : i64, tpu.core_type = #tpu.core_type<tc>, window_params = [{transform_indices = @transform_0, window_bounds = array<i64: 1, 1>}, {transform_indices = @transform_1, window_bounds = array<i64: 1, 5, 256>}, {transform_indices = @transform_2, window_bounds = array<i64: 1, 4, 256>}]} {
    %c0 = arith.constant 0 : index
    %c0_0 = arith.constant 0 : index
    %0 = memref.load %arg2[%c0, %c0_0] : memref<1x1xf32, #tpu.memory_space<smem>>
    %c0_1 = arith.constant 0 : index
    %c1 = arith.constant 1 : index
    %c0_2 = arith.constant 0 : index
    %1 = vector.load %arg3[%c0_1, %c1, %c0_2] : memref<1x5x256xf32, #tpu.memory_space<vmem>>, vector<1x4x256xf32>
    %2 = vector.shape_cast %1 : vector<1x4x256xf32> to vector<4x256xf32>
    %3 = vector.broadcast %0 : f32 to vector<4x256xf32>
    %4 = arith.addf %2, %3 : vector<4x256xf32>
    %c0_3 = arith.constant 0 : index
    %c0_4 = arith.constant 0 : index
    %c0_5 = arith.constant 0 : index
    %5 = vector.load %arg4[%c0_3, %c0_4, %c0_5] : memref<1x4x256xf32, #tpu.memory_space<vmem>>, vector<1x4x256xf32>
    %6 = vector.shape_cast %5 : vector<1x4x256xf32> to vector<4x256xf32>
    %7 = vector.shape_cast %4 : vector<4x256xf32> to vector<1x4x256xf32>
    tpu.vector_store %arg4[%c0_3, %c0_4, %c0_5], %7 {strides = array<i32>} : memref<1x4x256xf32, #tpu.memory_space<vmem>>, vector<1x4x256xf32>,
    return
  }
  func.func @transform_0(%arg0: i32, %arg1: i32) -> (i32, i32) {
    %c0_i32 = arith.constant 0 : i32
    %c0_i32_0 = arith.constant 0 : i32
    %c0_i32_1 = arith.constant 0 : i32
    return %c0_i32, %c0_i32_0 : i32, i32
  }
  func.func @transform_1(%arg0: i32, %arg1: i32) -> (i32, i32, i32) {
    %c0_i32 = arith.constant 0 : i32
    %c0_i32_0 = arith.constant 0 : i32
    return %arg0, %c0_i32, %arg1 : i32, i32, i32
  }
  func.func @transform_2(%arg0: i32, %arg1: i32) -> (i32, i32, i32) {
    %c0_i32 = arith.constant 0 : i32
    %c0_i32_0 = arith.constant 0 : i32
    return %arg0, %c0_i32, %arg1 : i32, i32, i32
  }
}

</mosaic_0001>

<llo_original>
// kernel: tpu_custom_call.1
$region0: #{tpu_custom_call.1}
  #allocation0 [shape = 'u32[]', space=smem, size = 0x4, offset = 0x4, fixed_abs, tag = 'smem constant byte address 0x4 - core index']
  #allocation1 [shape = 'u32[72,128]{1,0:T(1,128)}', space=vmem, size = 0x9000, scoped, tag = 'internal scratch']
  #allocation2 [shape = 'f32[1,1]{1,0:T(1,128)S(6)}', space=smem, size = 0x200, scoped, tag = 'scoped memory for tpu_custom_call.1']
  %s0 = inlined_call_operand.<no memory space> [shape: f32[1,1], index: 0, kind: input, shape index: {}]
  %s1 = inlined_call_operand.vmem [shape: f32[2,5,256], index: 1, kind: input, shape index: {}]
  %s2 = inlined_call_operand.hbm [shape: f32[2,4,256], index: 2, kind: output, shape index: {}]
  %s3 = sld [smem:[#allocation0]]
  $region41: #{tpu_custom_call.1} parent=0
    _
  %s5 = ssub.s32 1, %s3
  %s6 = scalar_select 0, %s5, %s3
  %7 = sst [smem:[#allocation2]] %s0
  $region1: #{tpu_custom_call.1} parent=0
    #allocation3 [shape = 'u8[8192]{0}', space=vmem, size = 0x2000, scoped, tag = 'output window, operand 0']
    #allocation4 [shape = 's32[2]{0}', space=sflag, size = 0x8, scoped, tag = 'scoped memory for tpu_custom_call.1']
    %8 = vsyncpa [#allocation4], 0
    %s9 = scalar_lea.sflag [#allocation4], 1
    %10 = vsyncpa %s9, 0
    loop: start=0, step=1, limit=4
    $region2: #{tpu_custom_call.1} parent=1 // loop_pre_header
      _
    $region3: #{tpu_custom_call.1} parent=1 // loop_header
      %s12 = sphi 0, %s16
      %p13 = scmp.ge.s32.totalorder %s12, 4
      %s19 = sphi 0, %s31
      %s20 = sphi 0, %s27
      %s21 = sphi 0, %s19
      %s22 = sphi 0, %s20
      %s23 = sphi 0, %s21
      %s24 = sphi 0, %s22
      %s32 = sphi 0, %s32
      %s34 = sphi 0, %s32
      %s35 = sphi 0, %s34
      %s49 = sphi 0, %s35
      %s57 = sphi 0, %s59
      %s60 = sphi 0, %s57
      %s61 = sphi 0, %s60
      %s77 = sphi 0, %s61
      %s85 = sphi 0, %s87
      %s88 = sphi 0, %s85
      %s89 = sphi 0, %s88
      %s105 = sphi 0, %s89
    $region4: #{tpu_custom_call.1} parent=1 // loop_header_branch
      %15 = sbr.rel (%p13) target = $region8
    $region5: #{tpu_custom_call.1} parent=1 // loop_body
      %s17 = ssub.s32 %s12, 1
      %s18 = ssub.s32 %s12, 2
      %s25 = sadd.s32 1, %s20
      %p26 = scmp.ge.s32.totalorder %s25, 1
      %s27 = scalar_select %p26, 0, %s25
      %s28 = sadd.s32 1, %s19
      %s29 = scalar_select %p26, %s28, %s19
      %p30 = scmp.ge.s32.totalorder %s29, 2
      %s31 = scalar_select %p30, 0, %s29
      %s33 = sadd.s32 %s32, 1
      %p36 = scmp.eq.s32.totalorder %s12, 1
      %p37 = scmp.ne.s32.totalorder %s32, %s34
      %p38 = scmp.eq.s32.totalorder %s12, 0
      %p39 = por %p37, %p38
      %p40 = scmp.ne.s32.totalorder %s32, %s34
      %p41 = scmp.eq.s32.totalorder %s17, 1
      %p42 = por %p40, %p41
      %p43 = scmp.ne.s32.totalorder %s34, %s35
      %p44 = scmp.eq.s32.totalorder %s17, 0
      %p45 = por %p43, %p44
      %p46 = scmp.ne.s32.totalorder %s34, %s35
      %p47 = scmp.eq.s32.totalorder %s18, 1
      %p48 = por %p46, %p47
      %p50 = scmp.ne.s32.totalorder %s35, %s49
      %p51 = scmp.eq.s32.totalorder %s18, 0
      %p52 = por %p50, %p51
      %s53 = ssub.s32 %s19, %s31
      %s54 = ssub.s32 %s20, %s27
      %s55 = sor.u32 %s53, %s54
      %p56 = scmp.eq.s32.totalorder %s55, 0
      %s58 = sadd.s32 %s57, 1
      %s59 = scalar_select %p56, %s57, %s58
      %p62 = pneg %p56
      %p63 = scmp.eq.s32.totalorder %s12, 1
      %p64 = por %p62, %p63
      %p65 = scmp.ne.s32.totalorder %s57, %s60
      %p66 = scmp.eq.s32.totalorder %s12, 0
      %p67 = por %p65, %p66
      %p68 = scmp.ne.s32.totalorder %s57, %s60
      %p69 = scmp.eq.s32.totalorder %s17, 1
      %p70 = por %p68, %p69
      %p71 = scmp.ne.s32.totalorder %s60, %s61
      %p72 = scmp.eq.s32.totalorder %s17, 0
      %p73 = por %p71, %p72
      %p74 = scmp.ne.s32.totalorder %s60, %s61
      %p75 = scmp.eq.s32.totalorder %s18, 1
      %p76 = por %p74, %p75
      %p78 = scmp.ne.s32.totalorder %s61, %s77
      %p79 = scmp.eq.s32.totalorder %s18, 0
      %p80 = por %p78, %p79
      %s81 = ssub.s32 %s19, %s31
      %s82 = ssub.s32 %s20, %s27
      %s83 = sor.u32 %s81, %s82
      %p84 = scmp.eq.s32.totalorder %s83, 0
      %s86 = sadd.s32 %s85, 1
      %s87 = scalar_select %p84, %s85, %s86
      %p90 = pneg %p84
      %p91 = scmp.eq.s32.totalorder %s12, 1
      %p92 = por %p90, %p91
      %p93 = scmp.ne.s32.totalorder %s85, %s88
      %p94 = scmp.eq.s32.totalorder %s12, 0
      %p95 = por %p93, %p94
      %p96 = scmp.ne.s32.totalorder %s85, %s88
      %p97 = scmp.eq.s32.totalorder %s17, 1
      %p98 = por %p96, %p97
      %p99 = scmp.ne.s32.totalorder %s88, %s89
      %p100 = scmp.eq.s32.totalorder %s17, 0
      %p101 = por %p99, %p100
      %p102 = scmp.ne.s32.totalorder %s88, %s89
      %p103 = scmp.eq.s32.totalorder %s18, 1
      %p104 = por %p102, %p103
      %p106 = scmp.ne.s32.totalorder %s89, %s105
      %p107 = scmp.eq.s32.totalorder %s18, 0
      %p108 = por %p106, %p107
      %p109 = scmp.le.s32.totalorder 1, %s12
      %p110 = scmp.lt.s32.totalorder %s12, 3
      %p111 = pnand %p109, %p110
      %p112 = pneg %p111
      // Predicated region
      $region9: #{tpu_custom_call.1} parent=5 // pred_check
        _
      $region10: #{tpu_custom_call.1} parent=5 // pred_check_branch
        %114 = sbr.rel (%p111) target = $region12
      $region11: #{tpu_custom_call.1} parent=5 // pred_region
        %s115 = ssub.s32 %s12, 1
        // Predicated region
        $region13: #{tpu_custom_call.1} parent=11 // pred_check
          %p116 = pneg %p45
        $region14: #{tpu_custom_call.1} parent=11 // pred_check_branch
          %118 = sbr.rel (%p116) target = $region16
        $region15: #{tpu_custom_call.1} parent=11 // pred_region
          _
        $region16: #{tpu_custom_call.1} parent=11 // pred_fallthru
          _
      $region12: #{tpu_custom_call.1} parent=5 // pred_fallthru
        _
      %p119 = scmp.lt.s32.totalorder %s12, 2
      // Predicated region
      $region17: #{tpu_custom_call.1} parent=5 // pred_check
        %p120 = pneg %p119
      $region18: #{tpu_custom_call.1} parent=5 // pred_check_branch
        %122 = sbr.rel (%p120) target = $region20
      $region19: #{tpu_custom_call.1} parent=5 // pred_region
        // Predicated region
        $region21: #{tpu_custom_call.1} parent=19 // pred_check
          %p123 = pneg %p67
        $region22: #{tpu_custom_call.1} parent=19 // pred_check_branch
          %125 = sbr.rel (%p123) target = $region24
        $region23: #{tpu_custom_call.1} parent=19 // pred_region
          %s126 = smul.u32 2, %s20
          %p127 = scmp.lt.s32.totalorder %s19, 1
          %s128 = scalar_select %p127, %s19, 1
          %p129 = scmp.lt.s32.totalorder %s126, 1
          %s130 = scalar_select %p129, %s126, 1
          %s131 = smul.addr %s128, 2
          %s132 = sadd.s32 %s130, %s131
          %s133 = smul.addr %s132, 8
          %s134 = scalar_lea.vmem %s1, %s133
          %s135 = smul.u32 2, %s20
        $region24: #{tpu_custom_call.1} parent=19 // pred_fallthru
          _
      $region20: #{tpu_custom_call.1} parent=5 // pred_fallthru
        _
      %p136 = scmp.le.s32.totalorder 1, %s12
      %p137 = scmp.lt.s32.totalorder %s12, 3
      %p138 = pnand %p136, %p137
      %p139 = pneg %p138
      // Predicated region
      $region25: #{tpu_custom_call.1} parent=5 // pred_check
        _
      $region26: #{tpu_custom_call.1} parent=5 // pred_check_branch
        %141 = sbr.rel (%p138) target = $region28
      $region27: #{tpu_custom_call.1} parent=5 // pred_region
        %s142 = ssub.s32 %s12, 1
        %p143 = pneg %p45
        %p144 = pneg %p42
        %s145 = smul.u32 2, %s22
        %p146 = scmp.lt.s32.totalorder %s21, 1
        %s147 = scalar_select %p146, %s21, 1
        %p148 = scmp.lt.s32.totalorder %s145, 1
        %s149 = scalar_select %p148, %s145, 1
        %s150 = smul.addr %s147, 2
        %s151 = sadd.s32 %s149, %s150
        %s152 = smul.addr %s151, 8
        %s153 = scalar_lea.vmem %s1, %s152
        %p154 = pneg %p73
        %p155 = pneg %p70
        %p156 = pneg %p101
        %p157 = pneg %p98
        %s158 = sand.u32 %s88, 1
        %s159 = scalar_lea.sflag [#allocation4], %s158
        %s160 = sand.u32 %s88, 1
        %s161 = smul.addr %s160, 8
        %s162 = scalar_lea.vmem [#allocation3], %s161
        %s163 = smul.u32 2, %s22
        %p164 = scmp.lt.s32.totalorder %s21, 1
        %s165 = scalar_select %p164, %s21, 1
        %p166 = scmp.lt.s32.totalorder %s163, 1
        %s167 = scalar_select %p166, %s163, 1
        %s168 = smul.addr %s165, 2
        %s169 = sadd.s32 %s167, %s168
        %s170 = smul.addr %s169, 8
        %s171 = scalar_lea.vmem %s1, %s170
        %s172 = smul.u32 2, %s22
        %s173 = smul.u32 2, %s22
        %s174 = sld [smem:[#allocation2]]
        %v175 = vld [vmem:[%s171] sm:$0x1e]
        %v176 = vld [vmem:[%s171 + $0x8] sm:$0x1e]
        %v177 = vstv %s174
        %v178 = vadd.f32 %v175, %v177
        %v179 = vadd.f32 %v176, %v177
        %v182 = vrot.slane %v179, 4
        %vm183 = vcmask 1043456
        %v184 = vsel %vm183, %v178, %v182
        %v185 = vsel %vm183, %v182, %v178
        %v186 = vrot.slane %v185, 4
        %vm187 = vcmask 1042432
        %vm188 = vcmask 1046532
        %vm189 = vmor %vm187, %vm188
        %v190 = vrot.slane %v184, 5
        %v191 = vrot.slane %v190, 4
        %v192 = vrot.slane %v186, 5
        %v193 = vsel %vm189, %v191, %v192
        %195 = vst [vmem:[%s162] sm:$0xff] %v193
        %s196 = sand.u32 %s88, 1
        %s197 = scalar_lea.sflag [#allocation4], %s196
        %s198 = sand.u32 %s88, 1
        %s199 = smul.addr %s198, 8
        %s200 = scalar_lea.vmem [#allocation3], %s199
        // Predicated region
        $region29: #{tpu_custom_call.1} parent=27 // pred_check
          %p201 = pneg %p98
        $region30: #{tpu_custom_call.1} parent=27 // pred_check_branch
          %203 = sbr.rel (%p201) target = $region32
        $region31: #{tpu_custom_call.1} parent=27 // pred_region
          %s204 = smul.u32 2, %s22
          %206 = vsyncadd %s197, 0
          %s207 = smul.addr %s21, 2
          %s208 = sadd.s32 %s204, %s207
          %s209 = smul.addr %s208, 4
          %s210 = scalar_lea.hbm %s2, %s209
          %s212 = sshll.u32 %s200, 4
          %s213 = int_to_ptr.vmem [resolvable:$true] %s212
          %s214 = sshll.u32 %s210, 4
          %s215 = int_to_ptr.hbm [resolvable:$true] %s214
          %217 = dma.vmem_to_hbm [thread:$0]  %s213, 128, %s215, %s197
        $region32: #{tpu_custom_call.1} parent=27 // pred_fallthru
          _
      $region28: #{tpu_custom_call.1} parent=5 // pred_fallthru
        _
      %p218 = scmp.le.s32.totalorder 2, %s12
      // Predicated region
      $region33: #{tpu_custom_call.1} parent=5 // pred_check
        %p219 = pneg %p218
      $region34: #{tpu_custom_call.1} parent=5 // pred_check_branch
        %221 = sbr.rel (%p219) target = $region36
      $region35: #{tpu_custom_call.1} parent=5 // pred_region
        %s222 = ssub.s32 %s12, 2
        // Predicated region
        $region37: #{tpu_custom_call.1} parent=35 // pred_check
          %p223 = pneg %p104
        $region38: #{tpu_custom_call.1} parent=35 // pred_check_branch
          %225 = sbr.rel (%p223) target = $region40
        $region39: #{tpu_custom_call.1} parent=35 // pred_region
          %s226 = sand.u32 %s89, 1
          %s227 = scalar_lea.sflag [#allocation4], %s226
          %s228 = sand.u32 %s89, 1
          %s229 = smul.addr %s228, 8
          %s230 = scalar_lea.vmem [#allocation3], %s229
          %232 = dma.done %s227, 128
        $region40: #{tpu_custom_call.1} parent=35 // pred_fallthru
          _
      $region36: #{tpu_custom_call.1} parent=5 // pred_fallthru
        _
    $region6: #{tpu_custom_call.1} parent=1 // loop_footer
      %s16 = sadd.s32 1, %s12
    $region7: #{tpu_custom_call.1} parent=1 // loop_footer_branch
      %11 = sbr.rel target = $region3
    $region8: #{tpu_custom_call.1} parent=1 // loop_exit
      _
    %233 = vsyncpa [#allocation4], 1
    %s234 = scalar_lea.sflag [#allocation4], 1
    %235 = vsyncpa %s234, 1

</llo_original>
